<compile_context>
chip_gen: v7x
topology: tpu7x:2x2x1
jax: 0.10.0
libtpu: 0.0.40
codegen_flags: <defaults>
</compile_context>

<pallas_src>
import jax
import jax.numpy as jnp
from jax.experimental import pallas as pl
from jax.experimental.pallas import tpu as pltpu


def _ste_ecoc_triplet_kernel(vals_ref, u_ref, we_ref, be_ref, wd_ref, bd_ref, out_ref):
    # vals_ref: (BM, V) rows of the stacked [values1; values2] slab
    # u_ref:    (BM, C) uniform [0,1) randoms for the bernoulli sample
    # we_ref:   (V, C), be_ref: (1, C), wd_ref: (C, N), bd_ref: (1, N)
    # out_ref:  (BM, N) rows of the stacked [decoder(ccode1); decoder(ccode2)] slab
    enc = jnp.dot(vals_ref[...], we_ref[...],
                  preferred_element_type=jnp.float32) + be_ref[...]
    p = jax.nn.sigmoid(enc)                       # STE forward, slope = 1.0
    code = (u_ref[...] < p).astype(jnp.float32)   # bernoulli(p) via uniform compare
    dec = jnp.dot(code, wd_ref[...],
                  preferred_element_type=jnp.float32) + bd_ref[...]
    out_ref[...] = dec.astype(out_ref.dtype)


def _pick_block_rows(rows, requested=None):
    if requested is not None:
        return requested
    if rows % 8 != 0:
        return rows                    # full-extent block satisfies the (8,128) rule
    for cand in (512, 256, 128, 64, 32, 16, 8):
        if cand <= rows and rows % cand == 0:
            return cand
    return rows


def ste_ecoc_triplet_forward(v, w_enc, b_enc, w_dec, b_dec, key, block_rows=None):
    """v: (B, V, 3) f32; w_enc: (V, C); b_enc: (1, C); w_dec: (C, N); b_dec: (1, N).

    Returns (o1, o2, o3) with o3 == o2, matching the PyTorch reference.
    """
    B, V, T = v.shape
    assert T == 3
    C = w_enc.shape[1]
    N = w_dec.shape[1]

    # Only triplet members 0 and 1 reach the outputs; stack their rows.
    vals = jnp.concatenate([v[:, :, 0], v[:, :, 1]], axis=0)        # (2B, V)
    rows = 2 * B
    # Host-side uniforms: works on TPU and in interpret mode, and stays correct
    # (independent samples) under any grid tiling.
    u = jax.random.uniform(key, (rows, C), dtype=jnp.float32)       # (2B, C)

    bm = _pick_block_rows(rows, block_rows)
    assert rows % bm == 0
    grid = (rows // bm,)

    grid_spec = pltpu.PrefetchScalarGridSpec(
        num_scalar_prefetch=0,
        grid=grid,
        in_specs=[
            pl.BlockSpec((bm, V), lambda i: (i, 0)),   # activations: tiled over rows
            pl.BlockSpec((bm, C), lambda i: (i, 0)),   # uniforms:    tiled over rows
            pl.BlockSpec((V, C), lambda i: (0, 0)),    # W_enc: resident
            pl.BlockSpec((1, C), lambda i: (0, 0)),    # b_enc: resident
            pl.BlockSpec((C, N), lambda i: (0, 0)),    # W_dec: resident
            pl.BlockSpec((1, N), lambda i: (0, 0)),    # b_dec: resident
        ],
        out_specs=pl.BlockSpec((bm, N), lambda i: (i, 0)),
    )

    out = pl.pallas_call(
        _ste_ecoc_triplet_kernel,
        out_shape=jax.ShapeDtypeStruct((rows, N), jnp.float32),
        grid_spec=grid_spec,
        compiler_params=pltpu.CompilerParams(
            dimension_semantics=("parallel",),         # shard row tiles across TCs (v7x)
        ),
    )(vals, u, w_enc, b_enc, w_dec, b_dec)

    o1 = out[:B]
    o2 = out[B:]
    return o1, o2, o2                                  # reference returns decoder(ccode2) twice


if __name__ == "__main__":
    # Small shapes: batch=8, vocabulary_size=32, code_size=128, nb_classe=16
    B, V, C, N = 8, 32, 128, 16

    key = jax.random.PRNGKey(0)
    k_v, k_we, k_be, k_wd, k_bd, k_rng = jax.random.split(key, 6)

    v = jax.random.normal(k_v, (B, V, 3), dtype=jnp.float32)

    # Deterministic nn.Linear-style init: U(-1/sqrt(fan_in), 1/sqrt(fan_in)),
    # stored pre-transposed as (in, out).
    bound_e = 1.0 / (V ** 0.5)
    w_enc = jax.random.uniform(k_we, (V, C), minval=-bound_e, maxval=bound_e, dtype=jnp.float32)
    b_enc = jax.random.uniform(k_be, (1, C), minval=-bound_e, maxval=bound_e, dtype=jnp.float32)
    bound_d = 1.0 / (C ** 0.5)
    w_dec = jax.random.uniform(k_wd, (C, N), minval=-bound_d, maxval=bound_d, dtype=jnp.float32)
    b_dec = jax.random.uniform(k_bd, (1, N), minval=-bound_d, maxval=bound_d, dtype=jnp.float32)

    # Force a real multi-step grid at this tiny size (2B=16 rows, 8-row tiles -> grid=(2,)).
    o1, o2, o3 = ste_ecoc_triplet_forward(v, w_enc, b_enc, w_dec, b_dec, k_rng, block_rows=8)
    jax.block_until_ready((o1, o2, o3))

    assert o1.shape == (B, N) and o2.shape == (B, N) and o3.shape == (B, N)
    assert bool(jnp.allclose(o2, o3))                  # third output duplicates the second

    # Pure-JAX reference using the identical uniform draws (exact same sampling rule).
    vals_ref = jnp.concatenate([v[:, :, 0], v[:, :, 1]], axis=0)
    u_ref = jax.random.uniform(k_rng, (2 * B, C), dtype=jnp.float32)
    enc_ref = vals_ref @ w_enc + b_enc
    code_ref = (u_ref < jax.nn.sigmoid(enc_ref)).astype(jnp.float32)
    dec_ref = code_ref @ w_dec + b_dec
    assert bool(jnp.allclose(o1, dec_ref[:B], atol=1e-5, rtol=1e-5))
    assert bool(jnp.allclose(o2, dec_ref[B:], atol=1e-5, rtol=1e-5))
    assert bool(jnp.all(jnp.isfinite(o1)))
    print("KERNEL_OK")
</pallas_src>

<mosaic_0001>
module attributes {stable_mosaic.version = 11 : i64} {
  func.func @_ste_ecoc_triplet_kernel(%arg0: i32, %arg1: memref<8x32xf32, #tpu.memory_space<vmem>>, %arg2: memref<8x128xf32, #tpu.memory_space<vmem>>, %arg3: memref<32x128xf32, #tpu.memory_space<vmem>>, %arg4: memref<1x128xf32, #tpu.memory_space<vmem>>, %arg5: memref<128x16xf32, #tpu.memory_space<vmem>>, %arg6: memref<1x16xf32, #tpu.memory_space<vmem>>, %arg7: memref<8x16xf32, #tpu.memory_space<vmem>>) attributes {dimension_semantics = [#tpu.dimension_semantics<parallel>], iteration_bounds = array<i64: 2>, scalar_prefetch = 0 : i64, scratch_operands = 0 : i64, tpu.core_type = #tpu.core_type<tc>, window_params = [{transform_indices = @transform_0, window_bounds = array<i64: 8, 32>}, {transform_indices = @transform_1, window_bounds = array<i64: 8, 128>}, {pipeline_mode = #tpu.pipeline_mode<synchronous>, transform_indices = @transform_2, window_bounds = array<i64: 32, 128>}, {pipeline_mode = #tpu.pipeline_mode<synchronous>, transform_indices = @transform_3, window_bounds = array<i64: 1, 128>}, {pipeline_mode = #tpu.pipeline_mode<synchronous>, transform_indices = @transform_4, window_bounds = array<i64: 128, 16>}, {pipeline_mode = #tpu.pipeline_mode<synchronous>, transform_indices = @transform_5, window_bounds = array<i64: 1, 16>}, {transform_indices = @transform_6, window_bounds = array<i64: 8, 16>}]} {
    %c0 = arith.constant 0 : index
    %c0_0 = arith.constant 0 : index
    %0 = vector.load %arg1[%c0, %c0_0] : memref<8x32xf32, #tpu.memory_space<vmem>>, vector<8x32xf32>
    %c0_1 = arith.constant 0 : index
    %c0_2 = arith.constant 0 : index
    %1 = vector.load %arg3[%c0_1, %c0_2] : memref<32x128xf32, #tpu.memory_space<vmem>>, vector<32x128xf32>
    %cst = arith.constant dense<0.000000e+00> : vector<8x128xf32>
    %2 = tpu.matmul %0, %1, %cst {dimension_numbers = #tpu.dot_dimension_numbers<[1], [0], [0], [1], [0, 0, 1, 1], [], []>} : vector<8x32xf32>, vector<32x128xf32>, vector<8x128xf32> -> vector<8x128xf32>
    %c0_3 = arith.constant 0 : index
    %c0_4 = arith.constant 0 : index
    %3 = vector.load %arg4[%c0_3, %c0_4] : memref<1x128xf32, #tpu.memory_space<vmem>>, vector<1x128xf32>
    %4 = vector.broadcast %3 : vector<1x128xf32> to vector<8x128xf32>
    %5 = arith.addf %2, %4 : vector<8x128xf32>
    %6 = arith.negf %5 : vector<8x128xf32>
    %7 = math.exp %6 : vector<8x128xf32>
    %cst_5 = arith.constant 1.000000e+00 : f32
    %8 = vector.broadcast %cst_5 : f32 to vector<8x128xf32>
    %9 = arith.addf %8, %7 : vector<8x128xf32>
    %10 = arith.divf %8, %9 : vector<8x128xf32>
    %c0_6 = arith.constant 0 : index
    %c0_7 = arith.constant 0 : index
    %11 = vector.load %arg2[%c0_6, %c0_7] : memref<8x128xf32, #tpu.memory_space<vmem>>, vector<8x128xf32>
    %12 = arith.cmpf olt, %11, %10 : vector<8x128xf32>
    %13 = arith.extui %12 : vector<8x128xi1> to vector<8x128xi32>
    %14 = arith.sitofp %13 : vector<8x128xi32> to vector<8x128xf32>
    %c0_8 = arith.constant 0 : index
    %c0_9 = arith.constant 0 : index
    %15 = vector.load %arg5[%c0_8, %c0_9] : memref<128x16xf32, #tpu.memory_space<vmem>>, vector<128x16xf32>
    %cst_10 = arith.constant dense<0.000000e+00> : vector<8x16xf32>
    %16 = tpu.matmul %14, %15, %cst_10 {dimension_numbers = #tpu.dot_dimension_numbers<[1], [0], [0], [1], [0, 0, 1, 1], [], []>} : vector<8x128xf32>, vector<128x16xf32>, vector<8x16xf32> -> vector<8x16xf32>
    %c0_11 = arith.constant 0 : index
    %c0_12 = arith.constant 0 : index
    %17 = vector.load %arg6[%c0_11, %c0_12] : memref<1x16xf32, #tpu.memory_space<vmem>>, vector<1x16xf32>
    %18 = vector.broadcast %17 : vector<1x16xf32> to vector<8x16xf32>
    %19 = arith.addf %16, %18 : vector<8x16xf32>
    %c0_13 = arith.constant 0 : index
    %c0_14 = arith.constant 0 : index
    %20 = vector.load %arg7[%c0_13, %c0_14] : memref<8x16xf32, #tpu.memory_space<vmem>>, vector<8x16xf32>
    tpu.vector_store %arg7[%c0_13, %c0_14], %19 {strides = array<i32>} : memref<8x16xf32, #tpu.memory_space<vmem>>, vector<8x16xf32>,
    return
  }
  func.func @transform_0(%arg0: i32) -> (i32, i32) {
    %c0_i32 = arith.constant 0 : i32
    %c0_i32_0 = arith.constant 0 : i32
    return %arg0, %c0_i32 : i32, i32
  }
  func.func @transform_1(%arg0: i32) -> (i32, i32) {
    %c0_i32 = arith.constant 0 : i32
    %c0_i32_0 = arith.constant 0 : i32
    return %arg0, %c0_i32 : i32, i32
  }
  func.func @transform_2(%arg0: i32) -> (i32, i32) {
    %c0_i32 = arith.constant 0 : i32
    %c0_i32_0 = arith.constant 0 : i32
    %c0_i32_1 = arith.constant 0 : i32
    return %c0_i32, %c0_i32_0 : i32, i32
  }
  func.func @transform_3(%arg0: i32) -> (i32, i32) {
    %c0_i32 = arith.constant 0 : i32
    %c0_i32_0 = arith.constant 0 : i32
    %c0_i32_1 = arith.constant 0 : i32
    return %c0_i32, %c0_i32_0 : i32, i32
  }
  func.func @transform_4(%arg0: i32) -> (i32, i32) {
    %c0_i32 = arith.constant 0 : i32
    %c0_i32_0 = arith.constant 0 : i32
    %c0_i32_1 = arith.constant 0 : i32
    return %c0_i32, %c0_i32_0 : i32, i32
  }
  func.func @transform_5(%arg0: i32) -> (i32, i32) {
    %c0_i32 = arith.constant 0 : i32
    %c0_i32_0 = arith.constant 0 : i32
    %c0_i32_1 = arith.constant 0 : i32
    return %c0_i32, %c0_i32_0 : i32, i32
  }
  func.func @transform_6(%arg0: i32) -> (i32, i32) {
    %c0_i32 = arith.constant 0 : i32
    %c0_i32_0 = arith.constant 0 : i32
    return %arg0, %c0_i32 : i32, i32
  }
}

</mosaic_0001>

<llo_original>
// kernel: tpu_custom_call.1
$region0: #{tpu_custom_call.1}
  #allocation0 [shape = 'u32[]', space=smem, size = 0x4, offset = 0x4, fixed_abs, tag = 'smem constant byte address 0x4 - core index']
  #allocation1 [shape = 'u32[144,128]{1,0:T(1,128)}', space=vmem, size = 0x12000, scoped, tag = 'internal scratch']
  %s0 = inlined_call_operand.vmem [shape: f32[16,32], index: 0, kind: input, shape index: {}]
  %s1 = inlined_call_operand.vmem [shape: f32[16,128], index: 1, kind: input, shape index: {}]
  %s2 = inlined_call_operand.vmem [shape: f32[32,128], index: 2, kind: input, shape index: {}]
  %s3 = inlined_call_operand.vmem [shape: f32[1,128], index: 3, kind: input, shape index: {}]
  %s4 = inlined_call_operand.vmem [shape: f32[128,16], index: 4, kind: input, shape index: {}]
  %s5 = inlined_call_operand.vmem [shape: f32[1,16], index: 5, kind: input, shape index: {}]
  %s6 = inlined_call_operand.hbm [shape: f32[16,16], index: 6, kind: output, shape index: {}]
  %s7 = sld [smem:[#allocation0]]
  $region57: #{tpu_custom_call.1} parent=0
    _
  %s9 = ssub.s32 1, %s7
  %s10 = scalar_select 0, %s9, %s7
  $region1: #{tpu_custom_call.1} parent=0
    #allocation2 [shape = 'u8[8192]{0}', space=vmem, size = 0x2000, scoped, tag = 'output window, operand 0']
    #allocation3 [shape = 's32[2]{0}', space=sflag, size = 0x8, scoped, tag = 'scoped memory for tpu_custom_call.1']
    %11 = vsyncpa [#allocation3], 0
    %s12 = scalar_lea.sflag [#allocation3], 1
    %13 = vsyncpa %s12, 0
    loop: start=0, step=1, limit=4
    $region2: #{tpu_custom_call.1} parent=1 // loop_pre_header
      _
    $region3: #{tpu_custom_call.1} parent=1 // loop_header
      %s15 = sphi 0, %s19
      %p16 = scmp.ge.s32.totalorder %s15, 4
      %s25 = sphi 0, %s27
      %s28 = sphi 0, %s25
      %s29 = sphi 0, %s28
      %s45 = sphi 0, %s29
      %s51 = sphi 0, %s53
      %s54 = sphi 0, %s51
      %s55 = sphi 0, %s54
      %s71 = sphi 0, %s55
      %s75 = sphi 0, %s75
      %s77 = sphi 0, %s75
      %s78 = sphi 0, %s77
      %s92 = sphi 0, %s78
      %s96 = sphi 0, %s96
      %s98 = sphi 0, %s96
      %s99 = sphi 0, %s98
      %s113 = sphi 0, %s99
      %s117 = sphi 0, %s117
      %s119 = sphi 0, %s117
      %s120 = sphi 0, %s119
      %s134 = sphi 0, %s120
      %s138 = sphi 0, %s138
      %s140 = sphi 0, %s138
      %s141 = sphi 0, %s140
      %s155 = sphi 0, %s141
      %s161 = sphi 0, %s163
      %s164 = sphi 0, %s161
      %s165 = sphi 0, %s164
      %s181 = sphi 0, %s165
    $region4: #{tpu_custom_call.1} parent=1 // loop_header_branch
      %18 = sbr.rel (%p16) target = $region8
    $region5: #{tpu_custom_call.1} parent=1 // loop_body
      %s20 = ssub.s32 %s15, 1
      %s21 = ssub.s32 %s15, 2
      %s22 = sadd.s32 %s15, 1
      %s23 = ssub.s32 %s15, %s22
      %p24 = scmp.eq.s32.totalorder %s23, 0
      %s26 = sadd.s32 %s25, 1
      %s27 = scalar_select %p24, %s25, %s26
      %p30 = pneg %p24
      %p31 = scmp.eq.s32.totalorder %s15, 1
      %p32 = por %p30, %p31
      %p33 = scmp.ne.s32.totalorder %s25, %s28
      %p34 = scmp.eq.s32.totalorder %s15, 0
      %p35 = por %p33, %p34
      %p36 = scmp.ne.s32.totalorder %s25, %s28
      %p37 = scmp.eq.s32.totalorder %s20, 1
      %p38 = por %p36, %p37
      %p39 = scmp.ne.s32.totalorder %s28, %s29
      %p40 = scmp.eq.s32.totalorder %s20, 0
      %p41 = por %p39, %p40
      %p42 = scmp.ne.s32.totalorder %s28, %s29
      %p43 = scmp.eq.s32.totalorder %s21, 1
      %p44 = por %p42, %p43
      %p46 = scmp.ne.s32.totalorder %s29, %s45
      %p47 = scmp.eq.s32.totalorder %s21, 0
      %p48 = por %p46, %p47
      %s49 = ssub.s32 %s15, %s22
      %p50 = scmp.eq.s32.totalorder %s49, 0
      %s52 = sadd.s32 %s51, 1
      %s53 = scalar_select %p50, %s51, %s52
      %p56 = pneg %p50
      %p57 = scmp.eq.s32.totalorder %s15, 1
      %p58 = por %p56, %p57
      %p59 = scmp.ne.s32.totalorder %s51, %s54
      %p60 = scmp.eq.s32.totalorder %s15, 0
      %p61 = por %p59, %p60
      %p62 = scmp.ne.s32.totalorder %s51, %s54
      %p63 = scmp.eq.s32.totalorder %s20, 1
      %p64 = por %p62, %p63
      %p65 = scmp.ne.s32.totalorder %s54, %s55
      %p66 = scmp.eq.s32.totalorder %s20, 0
      %p67 = por %p65, %p66
      %p68 = scmp.ne.s32.totalorder %s54, %s55
      %p69 = scmp.eq.s32.totalorder %s21, 1
      %p70 = por %p68, %p69
      %p72 = scmp.ne.s32.totalorder %s55, %s71
      %p73 = scmp.eq.s32.totalorder %s21, 0
      %p74 = por %p72, %p73
      %s76 = sadd.s32 %s75, 1
      %p79 = scmp.eq.s32.totalorder %s15, 1
      %p80 = scmp.ne.s32.totalorder %s75, %s77
      %p81 = scmp.eq.s32.totalorder %s15, 0
      %p82 = por %p80, %p81
      %p83 = scmp.ne.s32.totalorder %s75, %s77
      %p84 = scmp.eq.s32.totalorder %s20, 1
      %p85 = por %p83, %p84
      %p86 = scmp.ne.s32.totalorder %s77, %s78
      %p87 = scmp.eq.s32.totalorder %s20, 0
      %p88 = por %p86, %p87
      %p89 = scmp.ne.s32.totalorder %s77, %s78
      %p90 = scmp.eq.s32.totalorder %s21, 1
      %p91 = por %p89, %p90
      %p93 = scmp.ne.s32.totalorder %s78, %s92
      %p94 = scmp.eq.s32.totalorder %s21, 0
      %p95 = por %p93, %p94
      %s97 = sadd.s32 %s96, 1
      %p100 = scmp.eq.s32.totalorder %s15, 1
      %p101 = scmp.ne.s32.totalorder %s96, %s98
      %p102 = scmp.eq.s32.totalorder %s15, 0
      %p103 = por %p101, %p102
      %p104 = scmp.ne.s32.totalorder %s96, %s98
      %p105 = scmp.eq.s32.totalorder %s20, 1
      %p106 = por %p104, %p105
      %p107 = scmp.ne.s32.totalorder %s98, %s99
      %p108 = scmp.eq.s32.totalorder %s20, 0
      %p109 = por %p107, %p108
      %p110 = scmp.ne.s32.totalorder %s98, %s99
      %p111 = scmp.eq.s32.totalorder %s21, 1
      %p112 = por %p110, %p111
      %p114 = scmp.ne.s32.totalorder %s99, %s113
      %p115 = scmp.eq.s32.totalorder %s21, 0
      %p116 = por %p114, %p115
      %s118 = sadd.s32 %s117, 1
      %p121 = scmp.eq.s32.totalorder %s15, 1
      %p122 = scmp.ne.s32.totalorder %s117, %s119
      %p123 = scmp.eq.s32.totalorder %s15, 0
      %p124 = por %p122, %p123
      %p125 = scmp.ne.s32.totalorder %s117, %s119
      %p126 = scmp.eq.s32.totalorder %s20, 1
      %p127 = por %p125, %p126
      %p128 = scmp.ne.s32.totalorder %s119, %s120
      %p129 = scmp.eq.s32.totalorder %s20, 0
      %p130 = por %p128, %p129
      %p131 = scmp.ne.s32.totalorder %s119, %s120
      %p132 = scmp.eq.s32.totalorder %s21, 1
      %p133 = por %p131, %p132
      %p135 = scmp.ne.s32.totalorder %s120, %s134
      %p136 = scmp.eq.s32.totalorder %s21, 0
      %p137 = por %p135, %p136
      %s139 = sadd.s32 %s138, 1
      %p142 = scmp.eq.s32.totalorder %s15, 1
      %p143 = scmp.ne.s32.totalorder %s138, %s140
      %p144 = scmp.eq.s32.totalorder %s15, 0
      %p145 = por %p143, %p144
      %p146 = scmp.ne.s32.totalorder %s138, %s140
      %p147 = scmp.eq.s32.totalorder %s20, 1
      %p148 = por %p146, %p147
      %p149 = scmp.ne.s32.totalorder %s140, %s141
      %p150 = scmp.eq.s32.totalorder %s20, 0
      %p151 = por %p149, %p150
      %p152 = scmp.ne.s32.totalorder %s140, %s141
      %p153 = scmp.eq.s32.totalorder %s21, 1
      %p154 = por %p152, %p153
      %p156 = scmp.ne.s32.totalorder %s141, %s155
      %p157 = scmp.eq.s32.totalorder %s21, 0
      %p158 = por %p156, %p157
      %s159 = ssub.s32 %s15, %s22
      %p160 = scmp.eq.s32.totalorder %s159, 0
      %s162 = sadd.s32 %s161, 1
      %s163 = scalar_select %p160, %s161, %s162
      %p166 = pneg %p160
      %p167 = scmp.eq.s32.totalorder %s15, 1
      %p168 = por %p166, %p167
      %p169 = scmp.ne.s32.totalorder %s161, %s164
      %p170 = scmp.eq.s32.totalorder %s15, 0
      %p171 = por %p169, %p170
      %p172 = scmp.ne.s32.totalorder %s161, %s164
      %p173 = scmp.eq.s32.totalorder %s20, 1
      %p174 = por %p172, %p173
      %p175 = scmp.ne.s32.totalorder %s164, %s165
      %p176 = scmp.eq.s32.totalorder %s20, 0
      %p177 = por %p175, %p176
      %p178 = scmp.ne.s32.totalorder %s164, %s165
      %p179 = scmp.eq.s32.totalorder %s21, 1
      %p180 = por %p178, %p179
      %p182 = scmp.ne.s32.totalorder %s165, %s181
      %p183 = scmp.eq.s32.totalorder %s21, 0
      %p184 = por %p182, %p183
      %p185 = scmp.le.s32.totalorder 1, %s15
      %p186 = scmp.lt.s32.totalorder %s15, 3
      %p187 = pnand %p185, %p186
      %p188 = pneg %p187
      // Predicated region
      $region9: #{tpu_custom_call.1} parent=5 // pred_check
        _
      $region10: #{tpu_custom_call.1} parent=5 // pred_check_branch
        %190 = sbr.rel (%p187) target = $region12
      $region11: #{tpu_custom_call.1} parent=5 // pred_region
        %s191 = ssub.s32 %s15, 1
        // Predicated region
        $region13: #{tpu_custom_call.1} parent=11 // pred_check
          %p192 = pneg %p88
        $region14: #{tpu_custom_call.1} parent=11 // pred_check_branch
          %194 = sbr.rel (%p192) target = $region16
        $region15: #{tpu_custom_call.1} parent=11 // pred_region
          _
        $region16: #{tpu_custom_call.1} parent=11 // pred_fallthru
          _
        // Predicated region
        $region17: #{tpu_custom_call.1} parent=11 // pred_check
          %p195 = pneg %p109
        $region18: #{tpu_custom_call.1} parent=11 // pred_check_branch
          %197 = sbr.rel (%p195) target = $region20
        $region19: #{tpu_custom_call.1} parent=11 // pred_region
          _
        $region20: #{tpu_custom_call.1} parent=11 // pred_fallthru
          _
        // Predicated region
        $region21: #{tpu_custom_call.1} parent=11 // pred_check
          %p198 = pneg %p130
        $region22: #{tpu_custom_call.1} parent=11 // pred_check_branch
          %200 = sbr.rel (%p198) target = $region24
        $region23: #{tpu_custom_call.1} parent=11 // pred_region
          _
        $region24: #{tpu_custom_call.1} parent=11 // pred_fallthru
          _
        // Predicated region
        $region25: #{tpu_custom_call.1} parent=11 // pred_check
          %p201 = pneg %p151
        $region26: #{tpu_custom_call.1} parent=11 // pred_check_branch
          %203 = sbr.rel (%p201) target = $region28
        $region27: #{tpu_custom_call.1} parent=11 // pred_region
          _
        $region28: #{tpu_custom_call.1} parent=11 // pred_fallthru
          _
      $region12: #{tpu_custom_call.1} parent=5 // pred_fallthru
        _
      %p204 = scmp.lt.s32.totalorder %s15, 2
      // Predicated region
      $region29: #{tpu_custom_call.1} parent=5 // pred_check
        %p205 = pneg %p204
      $region30: #{tpu_custom_call.1} parent=5 // pred_check_branch
        %207 = sbr.rel (%p205) target = $region32
      $region31: #{tpu_custom_call.1} parent=5 // pred_region
        // Predicated region
        $region33: #{tpu_custom_call.1} parent=31 // pred_check
          %p208 = pneg %p35
        $region34: #{tpu_custom_call.1} parent=31 // pred_check_branch
          %210 = sbr.rel (%p208) target = $region36
        $region35: #{tpu_custom_call.1} parent=31 // pred_region
          %p211 = scmp.lt.s32.totalorder %s15, 1
          %s212 = scalar_select %p211, %s15, 1
          %s213 = smul.addr %s212, 8
          %s214 = scalar_lea.vmem %s0, %s213
        $region36: #{tpu_custom_call.1} parent=31 // pred_fallthru
          _
        // Predicated region
        $region37: #{tpu_custom_call.1} parent=31 // pred_check
          %p215 = pneg %p61
        $region38: #{tpu_custom_call.1} parent=31 // pred_check_branch
          %217 = sbr.rel (%p215) target = $region40
        $region39: #{tpu_custom_call.1} parent=31 // pred_region
          %p218 = scmp.lt.s32.totalorder %s15, 1
          %s219 = scalar_select %p218, %s15, 1
          %s220 = smul.addr %s219, 8
          %s221 = scalar_lea.vmem %s1, %s220
        $region40: #{tpu_custom_call.1} parent=31 // pred_fallthru
          _
      $region32: #{tpu_custom_call.1} parent=5 // pred_fallthru
        _
      %p222 = scmp.le.s32.totalorder 1, %s15
      %p223 = scmp.lt.s32.totalorder %s15, 3
      %p224 = pnand %p222, %p223
      %p225 = pneg %p224
      // Predicated region
      $region41: #{tpu_custom_call.1} parent=5 // pred_check
        _
      $region42: #{tpu_custom_call.1} parent=5 // pred_check_branch
        %227 = sbr.rel (%p224) target = $region44
      $region43: #{tpu_custom_call.1} parent=5 // pred_region
        %s228 = ssub.s32 %s15, 1
        %p229 = scmp.lt.s32.totalorder %s20, 1
        %s230 = scalar_select %p229, %s20, 1
        %s231 = smul.addr %s230, 8
        %s232 = scalar_lea.vmem %s0, %s231
        %p233 = pneg %p41
        %p234 = pneg %p38
        %p235 = scmp.lt.s32.totalorder %s20, 1
        %s236 = scalar_select %p235, %s20, 1
        %s237 = smul.addr %s236, 8
        %s238 = scalar_lea.vmem %s1, %s237
        %p239 = pneg %p67
        %p240 = pneg %p64
        %p241 = pneg %p88
        %p242 = pneg %p85
        %p243 = pneg %p109
        %p244 = pneg %p106
        %p245 = pneg %p130
        %p246 = pneg %p127
        %p247 = pneg %p151
        %p248 = pneg %p148
        %p249 = pneg %p177
        %p250 = pneg %p174
        %s251 = sand.u32 %s164, 1
        %s252 = scalar_lea.sflag [#allocation3], %s251
        %s253 = sand.u32 %s164, 1
        %s254 = smul.addr %s253, 8
        %s255 = scalar_lea.vmem [#allocation2], %s254
        %p256 = scmp.lt.s32.totalorder %s20, 1
        %s257 = scalar_select %p256, %s20, 1
        %s258 = smul.addr %s257, 8
        %s259 = scalar_lea.vmem %s0, %s258
        %p260 = scmp.lt.s32.totalorder %s20, 1
        %s261 = scalar_select %p260, %s20, 1
        %s262 = smul.addr %s261, 8
        %s263 = scalar_lea.vmem %s1, %s262
        %v264 = vld [vmem:[%s259] sm:$0xff]
        %v265 = vld [vmem:[%s2] sm:$0xff]
        %v266 = vld [vmem:[%s2 + $0x8] sm:$0xff]
        %v267 = vld [vmem:[%s2 + $0x10] sm:$0xff]
        %v268 = vld [vmem:[%s2 + $0x18] sm:$0xff]
        %v269 = vld [vmem:[%s3] sm:$0x1]
        %v271 = vlaneseq
        %v272 = vshrl.u32 %v271, 7
        %v273 = vsub.s32 0, %v272
        %v274 = vrot.slane %v269, %v273
        %vm276 = vcmask 261120
        %v278 = vsel %vm276, %v264, 0
        %280 = vmatprep.subr.mxu0 0.0
        %281 = vmatpush1.msra.mxu0 %v265
        %282 = vmatprep.subr.mxu0 0.0
        %283 = vmatpush1.msra.mxu0 %v266
        %284 = vmatprep.subr.mxu0 0.0
        %285 = vmatpush1.msra.mxu0 %v267
        %286 = vmatprep.subr.mxu0 0.0
        %287 = vmatpush1.msra.mxu0 %v268
        %288 = vmatprep.subr.mxu0 0.0
        %289 = vmatpush1.msra.mxu0 0.0
        %290 = vmatprep.subr.mxu0 0.0
        %291 = vmatpush1.msra.mxu0 0.0
        %292 = vmatprep.subr.mxu0 0.0
        %293 = vmatpush1.msra.mxu0 0.0
        %294 = vmatprep.subr.mxu0 0.0
        %295 = vmatpush1.msra.mxu0 0.0
        %296 = vmatprep.subr.mxu0 0.0
        %297 = vmatpush1.msra.mxu0 0.0
        %298 = vmatprep.subr.mxu0 0.0
        %299 = vmatpush1.msra.mxu0 0.0
        %300 = vmatprep.subr.mxu0 0.0
        %301 = vmatpush1.msra.mxu0 0.0
        %302 = vmatprep.subr.mxu0 0.0
        %303 = vmatpush1.msra.mxu0 0.0
        %304 = vmatprep.subr.mxu0 0.0
        %305 = vmatpush1.msra.mxu0 0.0
        %306 = vmatprep.subr.mxu0 0.0
        %307 = vmatpush1.msra.mxu0 0.0
        %308 = vmatprep.subr.mxu0 0.0
        %309 = vmatpush1.msra.mxu0 0.0
        %310 = vmatprep.subr.mxu0 0.0
        %311 = vmatpush1.msra.mxu0 0.0
        %312 = vmatprep.subr.mxu0 0.0
        %313 = vmatpush1.msra.mxu0 0.0
        %314 = vmatprep.subr.mxu0 0.0
        %315 = vmatpush1.msra.mxu0 0.0
        %316 = vmatprep.subr.mxu0 0.0
        %317 = vmatpush1.msra.mxu0 0.0
        %318 = vmatprep.subr.mxu0 0.0
        %319 = vmatpush1.msra.mxu0 0.0
        %320 = vmatprep.subr.mxu0 0.0
        %321 = vmatpush1.msra.mxu0 0.0
        %322 = vmatprep.subr.mxu0 0.0
        %323 = vmatpush1.msra.mxu0 0.0
        %324 = vmatprep.subr.mxu0 0.0
        %325 = vmatpush1.msra.mxu0 0.0
        %326 = vmatprep.subr.mxu0 0.0
        %327 = vmatpush1.msra.mxu0 0.0
        %328 = vmatprep.subr.mxu0 0.0
        %329 = vmatpush1.msra.mxu0 0.0
        %330 = vmatprep.subr.mxu0 0.0
        %331 = vmatpush1.msra.mxu0 0.0
        %332 = vmatprep.subr.mxu0 0.0
        %333 = vmatpush1.msra.mxu0 0.0
        %334 = vmatprep.subr.mxu0 0.0
        %335 = vmatpush1.msra.mxu0 0.0
        %336 = vmatprep.subr.mxu0 0.0
        %337 = vmatpush1.msra.mxu0 0.0
        %338 = vmatprep.subr.mxu0 0.0
        %339 = vmatpush1.msra.mxu0 0.0
        %340 = vmatprep.subr.mxu0 0.0
        %341 = vmatpush1.msra.mxu0 0.0
        %342 = vmatprep.subr.mxu0 0.0
        %343 = vmatpush1.msra.mxu0 0.0
        %344 = vmatprep.mubr.f32.mxu0 0.0
        %345 = vmatmul.mubr.f32.gmra.mrb[0].mxu0 %v278
        %v346 = vpop.f32.mrb[0].mxu0
        %v347 = vadd.f32 %v274, %v346
        %v348 = vpop.f32.mrb[0].mxu0
        %349 = vdwg.mxu0
        %v350 = vxor.u32 %v347, 2147483648
        %v351 = vmul.f32 %v350, 1.442695
        %v352 = vpow.pop %v351
        %v353 = vadd.f32 %v352, 1.0
        %v354 = vrcp.pop %v353
        %v355 = vmul.f32 1.0, %v354
        %v356 = vld [vmem:[%s263] sm:$0xff]
        %vm357 = vcmp.lt.f32.partialorder %v356, %v355
        %v358 = vsel %vm357, 1, 0
        %v359 = vcvt.s32.f32 %v358
        %v360 = vld [vmem:[%s4] sm:$0xff]
        %v361 = vld [vmem:[%s4 + $0x8] sm:$0xff]
        %v362 = vld [vmem:[%s4 + $0x10] sm:$0xff]
        %v363 = vld [vmem:[%s4 + $0x18] sm:$0xff]
        %v364 = vld [vmem:[%s4 + $0x20] sm:$0xff]
        %v365 = vld [vmem:[%s4 + $0x28] sm:$0xff]
        %v366 = vld [vmem:[%s4 + $0x30] sm:$0xff]
        %v367 = vld [vmem:[%s4 + $0x38] sm:$0xff]
        %v368 = vld [vmem:[%s4 + $0x40] sm:$0xff]
        %v369 = vld [vmem:[%s4 + $0x48] sm:$0xff]
        %v370 = vld [vmem:[%s4 + $0x50] sm:$0xff]
        %v371 = vld [vmem:[%s4 + $0x58] sm:$0xff]
        %v372 = vld [vmem:[%s4 + $0x60] sm:$0xff]
        %v373 = vld [vmem:[%s4 + $0x68] sm:$0xff]
        %v374 = vld [vmem:[%s4 + $0x70] sm:$0xff]
        %v375 = vld [vmem:[%s4 + $0x78] sm:$0xff]
        %v376 = vld [vmem:[%s5] sm:$0x1]
        %v378 = vlaneseq
        %v379 = vshrl.u32 %v378, 7
        %v380 = vsub.s32 0, %v379
        %v381 = vrot.slane %v376, %v380
        %383 = vmatprep.subr.mxu0 0.0
        %384 = vmatpush1.msra.mxu0 %v360
        %385 = vmatprep.subr.mxu0 0.0
        %386 = vmatpush1.msra.mxu0 %v361
        %387 = vmatprep.subr.mxu0 0.0
        %388 = vmatpush1.msra.mxu0 %v362
        %389 = vmatprep.subr.mxu0 0.0
        %390 = vmatpush1.msra.mxu0 %v363
        %391 = vmatprep.subr.mxu0 0.0
        %392 = vmatpush1.msra.mxu0 %v364
        %393 = vmatprep.subr.mxu0 0.0
        %394 = vmatpush1.msra.mxu0 %v365
        %395 = vmatprep.subr.mxu0 0.0
        %396 = vmatpush1.msra.mxu0 %v366
        %397 = vmatprep.subr.mxu0 0.0
        %398 = vmatpush1.msra.mxu0 %v367
        %399 = vmatprep.subr.mxu0 0.0
        %400 = vmatpush1.msra.mxu0 %v368
        %401 = vmatprep.subr.mxu0 0.0
        %402 = vmatpush1.msra.mxu0 %v369
        %403 = vmatprep.subr.mxu0 0.0
        %404 = vmatpush1.msra.mxu0 %v370
        %405 = vmatprep.subr.mxu0 0.0
        %406 = vmatpush1.msra.mxu0 %v371
        %407 = vmatprep.subr.mxu0 0.0
        %408 = vmatpush1.msra.mxu0 %v372
        %409 = vmatprep.subr.mxu0 0.0
        %410 = vmatpush1.msra.mxu0 %v373
        %411 = vmatprep.subr.mxu0 0.0
        %412 = vmatpush1.msra.mxu0 %v374
        %413 = vmatprep.subr.mxu0 0.0
        %414 = vmatpush1.msra.mxu0 %v375
        %415 = vmatprep.subr.mxu0 0.0
        %416 = vmatpush1.msra.mxu0 0.0
        %417 = vmatprep.subr.mxu0 0.0
        %418 = vmatpush1.msra.mxu0 0.0
        %419 = vmatprep.subr.mxu0 0.0
        %420 = vmatpush1.msra.mxu0 0.0
        %421 = vmatprep.subr.mxu0 0.0
        %422 = vmatpush1.msra.mxu0 0.0
        %423 = vmatprep.subr.mxu0 0.0
        %424 = vmatpush1.msra.mxu0 0.0
        %425 = vmatprep.subr.mxu0 0.0
        %426 = vmatpush1.msra.mxu0 0.0
        %427 = vmatprep.subr.mxu0 0.0
        %428 = vmatpush1.msra.mxu0 0.0
        %429 = vmatprep.subr.mxu0 0.0
        %430 = vmatpush1.msra.mxu0 0.0
        %431 = vmatprep.subr.mxu0 0.0
        %432 = vmatpush1.msra.mxu0 0.0
        %433 = vmatprep.subr.mxu0 0.0
        %434 = vmatpush1.msra.mxu0 0.0
        %435 = vmatprep.subr.mxu0 0.0
        %436 = vmatpush1.msra.mxu0 0.0
        %437 = vmatprep.subr.mxu0 0.0
        %438 = vmatpush1.msra.mxu0 0.0
        %439 = vmatprep.subr.mxu0 0.0
        %440 = vmatpush1.msra.mxu0 0.0
        %441 = vmatprep.subr.mxu0 0.0
        %442 = vmatpush1.msra.mxu0 0.0
        %443 = vmatprep.subr.mxu0 0.0
        %444 = vmatpush1.msra.mxu0 0.0
        %445 = vmatprep.subr.mxu0 0.0
        %446 = vmatpush1.msra.mxu0 0.0
        %447 = vmatprep.mubr.f32.mxu0 0.0
        %448 = vmatmul.mubr.f32.gmra.mrb[0].mxu0 %v359
        %v449 = vpop.f32.mrb[0].mxu0
        %v450 = vadd.f32 %v381, %v449
        %v451 = vpop.f32.mrb[0].mxu0
        %452 = vdwg.mxu0
        %vm453 = vcmask 130048
        %454 = vst.msk [vmem:[%s255] sm:$0xff] %vm453, %v450
        %s455 = sand.u32 %s164, 1
        %s456 = scalar_lea.sflag [#allocation3], %s455
        %s457 = sand.u32 %s164, 1
        %s458 = smul.addr %s457, 8
        %s459 = scalar_lea.vmem [#allocation2], %s458
        // Predicated region
        $region45: #{tpu_custom_call.1} parent=43 // pred_check
          %p460 = pneg %p174
        $region46: #{tpu_custom_call.1} parent=43 // pred_check_branch
          %462 = sbr.rel (%p460) target = $region48
        $region47: #{tpu_custom_call.1} parent=43 // pred_region
          %s464 = ssub.s32 128, 128
          %465 = vsyncadd %s456, %s464
          %s466 = smul.addr %s20, 128
          %s467 = scalar_lea.hbm %s6, %s466
          %s469 = sshll.u32 %s459, 4
          %s470 = int_to_ptr.vmem [resolvable:$true] %s469
          %472 = dma.vmem_to_hbm [thread:$0]  %s470, 128, %s467, %s456
        $region48: #{tpu_custom_call.1} parent=43 // pred_fallthru
          _
      $region44: #{tpu_custom_call.1} parent=5 // pred_fallthru
        _
      %p473 = scmp.le.s32.totalorder 2, %s15
      // Predicated region
      $region49: #{tpu_custom_call.1} parent=5 // pred_check
        %p474 = pneg %p473
      $region50: #{tpu_custom_call.1} parent=5 // pred_check_branch
        %476 = sbr.rel (%p474) target = $region52
      $region51: #{tpu_custom_call.1} parent=5 // pred_region
        %s477 = ssub.s32 %s15, 2
        // Predicated region
        $region53: #{tpu_custom_call.1} parent=51 // pred_check
          %p478 = pneg %p180
        $region54: #{tpu_custom_call.1} parent=51 // pred_check_branch
          %480 = sbr.rel (%p478) target = $region56
        $region55: #{tpu_custom_call.1} parent=51 // pred_region
          %s481 = sand.u32 %s165, 1
          %s482 = scalar_lea.sflag [#allocation3], %s481
          %s483 = sand.u32 %s165, 1
          %s484 = smul.addr %s483, 8
          %s485 = scalar_lea.vmem [#allocation2], %s484
          %486 = dma.done %s482, 128
        $region56: #{tpu_custom_call.1} parent=51 // pred_fallthru
          _
      $region52: #{tpu_custom_call.1} parent=5 // pred_fallthru
        _
    $region6: #{tpu_custom_call.1} parent=1 // loop_footer
      %s19 = sadd.s32 1, %s15
    $region7: #{tpu_custom_call.1} parent=1 // loop_footer_branch
      %14 = sbr.rel target = $region3
    $region8: #{tpu_custom_call.1} parent=1 // loop_exit
      _
    %487 = vsyncpa [#allocation3], 1
    %s488 = scalar_lea.sflag [#allocation3], 1
    %489 = vsyncpa %s488, 1

</llo_original>
